<compile_context>
chip_gen: v7x
topology: tpu7x:2x2x1
jax: 0.10.0
libtpu: 0.0.40
codegen_flags: <defaults>
</compile_context>

<pallas_src>
import functools
import math

import jax
import jax.numpy as jnp
from jax import lax
from jax.experimental import pallas as pl
from jax.experimental.pallas import tpu as pltpu


# ----------------------------- kernels ------------------------------------- #

def _row_kernel_int(x_ref, o_ref, *, eps, int_p, inv_cols):
    """x_ref: (tile_r, cols); o_ref: (tile_r, 1) f32 mean of clamp(x,eps)**p."""
    x = x_ref[...].astype(jnp.float32)
    xp = lax.integer_pow(jnp.maximum(x, eps), int_p)          # VPU-only fast path
    o_ref[...] = (jnp.sum(xp, axis=-1, keepdims=True) * inv_cols).astype(o_ref.dtype)


def _row_kernel_gen(p_ref, x_ref, o_ref, *, eps, inv_cols):
    """General traced / non-integer p: x**p = exp(p*log(x)) on the EUP."""
    x = x_ref[...].astype(jnp.float32)
    xc = jnp.maximum(x, eps)
    p = p_ref[0, 0]
    xp = jnp.exp(p * jnp.log(xc))
    o_ref[...] = (jnp.sum(xp, axis=-1, keepdims=True) * inv_cols).astype(o_ref.dtype)


def _packed_kernel_int(x_ref, s_ref, o_ref, *, eps, int_p):
    """Lane-dense slab: x_ref (tile_g, G*cols); s_ref (G*cols, G) 0/1 segment
    matrix; o_ref (tile_g, G) holds per-logical-row sums (exact, f32 accum)."""
    x = x_ref[...].astype(jnp.float32)
    xp = lax.integer_pow(jnp.maximum(x, eps), int_p)
    o_ref[...] = jnp.dot(xp, s_ref[...], preferred_element_type=jnp.float32)


def _packed_kernel_gen(p_ref, x_ref, s_ref, o_ref, *, eps):
    x = x_ref[...].astype(jnp.float32)
    xc = jnp.maximum(x, eps)
    p = p_ref[0, 0]
    xp = jnp.exp(p * jnp.log(xc))
    o_ref[...] = jnp.dot(xp, s_ref[...], preferred_element_type=jnp.float32)


# ----------------------------- sizing helpers ------------------------------ #

_N_INPUT_BUFS = 3      # pl.Buffered(3) on the streamed input (when grid is deep)
_MIN_GRID_STEPS = 4    # so "parallel" actually shards across v7x's two TCs


def _static_int_p(p):
    """Return p as a small Python int if it is concrete & integral, else None."""
    try:
        p_val = float(jnp.asarray(p).reshape(()))
    except (jax.errors.ConcretizationTypeError, TypeError):
        return None
    if p_val == round(p_val) and 1 <= int(round(p_val)) <= 16:
        return int(round(p_val))
    return None


def _vmem_budget():
    """(plan_bytes, vmem_limit_bytes) derived from the actual chip's VMEM."""
    try:
        cap = int(pltpu.get_tpu_info().vmem_capacity_bytes)
    except Exception:  # no chip info at trace time -> assume the smallest (v7x)
        cap = 64 * 1024 * 1024
    plan = min(int(cap * 0.45), 72 * 1024 * 1024)     # VMEM we plan to occupy
    limit = min((cap * 3) // 4, 100 * 1024 * 1024)    # scoped-VMEM limit to request
    return plan, limit


def _pick_row_tile(n_rows, width_elems, itemsize, plan_bytes, sublane):
    """Largest row tile that fits the VMEM plan, capped so grid >= MIN_GRID_STEPS."""
    if n_rows <= sublane:
        return int(n_rows)                             # full-extent block
    # Resident bytes per block row: N pipeline buffers (native dtype) + ~2 f32 temps.
    per_row = width_elems * (_N_INPUT_BUFS * itemsize + 2 * 4)
    t = max(sublane, (plan_bytes // per_row) // sublane * sublane)
    target = pl.cdiv(pl.cdiv(n_rows, _MIN_GRID_STEPS), sublane) * sublane
    return int(min(t, max(sublane, target)))


def _input_spec(tile_shape, steps):
    if steps >= _N_INPUT_BUFS:
        return pl.BlockSpec(tile_shape, lambda i: (i, 0),
                            pipeline_mode=pl.Buffered(_N_INPUT_BUFS))
    return pl.BlockSpec(tile_shape, lambda i: (i, 0))


# ----------------------------- wrapper -------------------------------------- #

def gem_pallas(x, p, eps=1e-6):
    """x: (N, C, H, W) -> (N, C, 1, 1). Matches avg_pool2d(clamp(x,eps)**p)**(1/p)."""
    N, C, H, W = x.shape
    rows, cols = N * C, H * W
    itemsize = jnp.dtype(x.dtype).itemsize
    sublane = 8 if itemsize >= 4 else (16 if itemsize == 2 else 32)
    int_p = _static_int_p(p)
    plan, vmem_limit = _vmem_budget()
    compiler_params = pltpu.CompilerParams(
        dimension_semantics=("parallel",), vmem_limit_bytes=int(vmem_limit))

    # Lane-dense "packed" layout when H*W is not a multiple of 128.
    use_packed = False
    if cols % 128 != 0:
        g = 128 // math.gcd(cols, 128)
        packed_cols = g * cols                         # multiple of 128 by construction
        smat_bytes = packed_cols * g * 4
        if rows % g == 0 and packed_cols <= 32768 and smat_bytes <= 8 * 1024 * 1024:
            use_packed = True

    if use_packed:
        n_groups = rows // g
        x2 = x.reshape(n_groups, packed_cols)          # contiguous, lane-dense view
        seg_ids = jnp.arange(packed_cols, dtype=jnp.int32) // cols
        smat = (seg_ids[:, None] ==
                jnp.arange(g, dtype=jnp.int32)[None, :]).astype(jnp.float32)

        tile_g = _pick_row_tile(n_groups, packed_cols, itemsize,
                                plan - 2 * smat_bytes, sublane)
        steps = pl.cdiv(n_groups, tile_g)
        x_spec = _input_spec((tile_g, packed_cols), steps)
        s_spec = pl.BlockSpec((packed_cols, g), lambda i: (0, 0))   # resident, fetched once
        o_spec = pl.BlockSpec((tile_g, g), lambda i: (i, 0))
        out_shape = jax.ShapeDtypeStruct((n_groups, g), jnp.float32)

        flops = rows * cols * ((int_p + 2) if int_p is not None else 6) \
            + 2 * rows * cols * g
        cost = pl.CostEstimate(
            flops=int(flops),
            transcendentals=0 if int_p is not None else 2 * rows * cols,
            bytes_accessed=int(rows * cols * itemsize + smat_bytes + rows * 4))

        if int_p is not None:
            kern = functools.partial(_packed_kernel_int, eps=eps, int_p=int_p)
            in_specs, args = [x_spec, s_spec], (x2, smat)
        else:
            kern = functools.partial(_packed_kernel_gen, eps=eps)
            p_arr = jnp.asarray(p, jnp.float32).reshape(1, 1)
            in_specs = [pl.BlockSpec(memory_space=pltpu.MemorySpace.SMEM), x_spec, s_spec]
            args = (p_arr, x2, smat)

        sums = pl.pallas_call(
            kern, out_shape=out_shape, grid=(steps,),
            in_specs=in_specs, out_specs=o_spec,
            compiler_params=compiler_params, cost_estimate=cost)(*args)
        m = sums.reshape(rows, 1) * (1.0 / cols)
    else:
        x2 = x.reshape(rows, cols)
        padded_cols = max(pl.cdiv(cols, 128) * 128, 128)   # VMEM-resident lane width
        tile_r = _pick_row_tile(rows, padded_cols, itemsize, plan, sublane)
        steps = pl.cdiv(rows, tile_r)
        x_spec = _input_spec((tile_r, cols), steps)
        o_spec = pl.BlockSpec((tile_r, 1), lambda i: (i, 0))
        out_shape = jax.ShapeDtypeStruct((rows, 1), jnp.float32)

        flops = rows * cols * ((int_p + 2) if int_p is not None else 6)
        cost = pl.CostEstimate(
            flops=int(flops),
            transcendentals=0 if int_p is not None else 2 * rows * cols,
            bytes_accessed=int(rows * cols * itemsize + rows * 4))

        if int_p is not None:
            kern = functools.partial(_row_kernel_int, eps=eps, int_p=int_p,
                                     inv_cols=1.0 / cols)
            in_specs, args = [x_spec], (x2,)
        else:
            kern = functools.partial(_row_kernel_gen, eps=eps, inv_cols=1.0 / cols)
            p_arr = jnp.asarray(p, jnp.float32).reshape(1, 1)
            in_specs = [pl.BlockSpec(memory_space=pltpu.MemorySpace.SMEM), x_spec]
            args = (p_arr, x2)

        m = pl.pallas_call(
            kern, out_shape=out_shape, grid=(steps,),
            in_specs=in_specs, out_specs=o_spec,
            compiler_params=compiler_params, cost_estimate=cost)(*args)

    # Lane-sparse final 1/p root on the tiny (N*C, 1) vector, outside the kernel.
    p_scalar = jnp.asarray(p, jnp.float32).reshape(())
    y = jnp.power(m, 1.0 / p_scalar)                   # m > 0 guaranteed by the eps clamp
    return y.reshape(N, C, 1, 1).astype(x.dtype)


class GeM:
    """JAX/Pallas port of the PyTorch GeM module (forward pass only)."""

    def __init__(self, p=3, eps=1e-6, p_trainable=True):
        # deterministic init: p = ones(1) * p  (same as the PyTorch module)
        self.p = jnp.ones((1,), jnp.float32) * p
        self.eps = eps

    def __call__(self, x):
        return gem_pallas(x, self.p, eps=self.eps)


def _gem_reference(x, p, eps):
    # pure-JAX reference for sanity checks
    xc = jnp.maximum(x.astype(jnp.float32), eps)
    m = jnp.mean(xc ** p, axis=(-2, -1), keepdims=True)
    return (m ** (1.0 / p)).astype(x.dtype)


if __name__ == "__main__":
    # 1) Primary shape: H*W = 256 (multiple of 128) -> lane-dense "row" path.
    key = jax.random.PRNGKey(0)
    N, C, H, W = 2, 4, 16, 16
    x = jax.random.normal(key, (N, C, H, W), dtype=jnp.float32)
    mod = GeM(p=3.0, eps=1e-6, p_trainable=True)
    y = jax.block_until_ready(mod(x))
    y_ref = _gem_reference(x, float(mod.p[0]), mod.eps)
    assert y.shape == (N, C, 1, 1), y.shape
    assert jnp.allclose(y, y_ref, rtol=1e-4, atol=1e-5), (y, y_ref)

    # 2) 7x7 feature map: H*W = 49 (not a multiple of 128) -> "packed" MXU path.
    x7 = jax.random.normal(jax.random.PRNGKey(0), (2, 128, 7, 7), dtype=jnp.float32)
    y7 = jax.block_until_ready(mod(x7))
    y7_ref = _gem_reference(x7, float(mod.p[0]), mod.eps)
    assert y7.shape == (2, 128, 1, 1), y7.shape
    assert jnp.allclose(y7, y7_ref, rtol=2e-3, atol=2e-3), (y7, y7_ref)

    # 3) Non-integer p -> general exp(p*log(x)) kernel with the SMEM p operand.
    y25 = jax.block_until_ready(gem_pallas(x, jnp.asarray([2.5], jnp.float32), eps=1e-6))
    y25_ref = _gem_reference(x, 2.5, 1e-6)
    assert jnp.allclose(y25, y25_ref, rtol=1e-3, atol=1e-4), (y25, y25_ref)

    print("KERNEL_OK")
</pallas_src>

<mosaic_0001>
module attributes {stable_mosaic.version = 11 : i64} {
  func.func @_row_kernel_int(%arg0: i32, %arg1: memref<8x256xf32, #tpu.memory_space<vmem>>, %arg2: memref<8x1xf32, #tpu.memory_space<vmem>>) attributes {dimension_semantics = [#tpu.dimension_semantics<parallel>], iteration_bounds = array<i64: 1>, scalar_prefetch = 0 : i64, scratch_operands = 0 : i64, tpu.core_type = #tpu.core_type<tc>, window_params = [{transform_indices = @transform_0, window_bounds = array<i64: 8, 256>}, {transform_indices = @transform_1, window_bounds = array<i64: 8, 1>}]} {
    %c0 = arith.constant 0 : index
    %c0_0 = arith.constant 0 : index
    %0 = vector.load %arg1[%c0, %c0_0] : memref<8x256xf32, #tpu.memory_space<vmem>>, vector<8x256xf32>
    %cst = arith.constant 9.99999997E-7 : f32
    %1 = vector.broadcast %cst : f32 to vector<8x256xf32>
    %2 = arith.maximumf %0, %1 : vector<8x256xf32>
    %3 = arith.mulf %2, %2 : vector<8x256xf32>
    %4 = arith.mulf %2, %3 : vector<8x256xf32>
    %cst_1 = arith.constant dense<0.000000e+00> : vector<8xf32>
    %5 = vector.multi_reduction <add>, %4, %cst_1 [1] : vector<8x256xf32> to vector<8xf32>
    %6 = vector.shape_cast %5 : vector<8xf32> to vector<8x1xf32>
    %cst_2 = arith.constant 3.906250e-03 : f32
    %7 = vector.broadcast %cst_2 : f32 to vector<8x1xf32>
    %8 = arith.mulf %6, %7 : vector<8x1xf32>
    %c0_3 = arith.constant 0 : index
    %c0_4 = arith.constant 0 : index
    %9 = vector.load %arg2[%c0_3, %c0_4] : memref<8x1xf32, #tpu.memory_space<vmem>>, vector<8x1xf32>
    tpu.vector_store %arg2[%c0_3, %c0_4], %8 {strides = array<i32>} : memref<8x1xf32, #tpu.memory_space<vmem>>, vector<8x1xf32>,
    return
  }
  func.func @transform_0(%arg0: i32) -> (i32, i32) {
    %c0_i32 = arith.constant 0 : i32
    %c0_i32_0 = arith.constant 0 : i32
    return %arg0, %c0_i32 : i32, i32
  }
  func.func @transform_1(%arg0: i32) -> (i32, i32) {
    %c0_i32 = arith.constant 0 : i32
    %c0_i32_0 = arith.constant 0 : i32
    return %arg0, %c0_i32 : i32, i32
  }
}

</mosaic_0001>

<llo_original>
// kernel: tpu_custom_call.1
$region0: #{tpu_custom_call.1}
  #allocation0 [shape = 'u32[]', space=smem, size = 0x4, offset = 0x4, fixed_abs, tag = 'smem constant byte address 0x4 - core index']
  #allocation1 [shape = 'u32[144,128]{1,0:T(1,128)}', space=vmem, size = 0x12000, scoped, tag = 'internal scratch']
  %s0 = inlined_call_operand.hbm [shape: f32[8,256], index: 0, kind: input, shape index: {}]
  %s1 = inlined_call_operand.vmem [shape: f32[8,1], index: 1, kind: output, shape index: {}]
  %s2 = sld [smem:[#allocation0]]
  $region18: #{tpu_custom_call.1} parent=0
    _
  %s4 = ssub.s32 1, %s2
  %s5 = scalar_select 0, %s4, %s2
  $region1: #{tpu_custom_call.1} parent=0
    #allocation2 [shape = 'u8[8192]{0}', space=vmem, size = 0x2000, scoped, tag = 'input window, operand 0, single buffered']
    #allocation3 [shape = 's32[1]{0}', space=sflag, size = 0x4, scoped, tag = 'scoped memory for tpu_custom_call.1']
    %6 = vsyncpa [#allocation3], 0
    // Predicated region
    $region2: #{tpu_custom_call.1} parent=1 // pred_check
      _
    $region3: #{tpu_custom_call.1} parent=1 // pred_check_branch
      %8 = sbr.rel (0) target = $region5
    $region4: #{tpu_custom_call.1} parent=1 // pred_region
      %s10 = ssub.s32 256, 256
      %11 = vsyncadd [#allocation3], %s10
      %s13 = sshll.u32 [#allocation2], 4
      %s14 = int_to_ptr.vmem [resolvable:$true] %s13
      %16 = dma.hbm_to_vmem [thread:$0]  %s0, 256, %s14, [#allocation3]
    $region5: #{tpu_custom_call.1} parent=1 // pred_fallthru
      _
    // Predicated region
    $region6: #{tpu_custom_call.1} parent=1 // pred_check
      _
    $region7: #{tpu_custom_call.1} parent=1 // pred_check_branch
      %18 = sbr.rel (0) target = $region9
    $region8: #{tpu_custom_call.1} parent=1 // pred_region
      %19 = dma.done [#allocation3], 256
    $region9: #{tpu_custom_call.1} parent=1 // pred_fallthru
      _
    %v20 = vld [vmem:[#allocation2] sm:$0xff]
    %v21 = vld [vmem:[#allocation2 + $0x8] sm:$0xff]
    %v22 = vmax.f32 %v20, 1e-06
    %v23 = vmax.f32 %v21, 1e-06
    %v24 = vmul.f32 %v22, %v22
    %v25 = vmul.f32 %v23, %v23
    %v26 = vmul.f32 %v22, %v24
    %v27 = vmul.f32 %v23, %v25
    %v28 = vadd.f32 %v26, %v27
    %29 = vadd.xlane.f32.xlu0 %v28
    %v30 = vpop.xlane.xlu0 %29
    %v31 = vmul.f32 %v30, 0.00390625
    %vm32 = vcmask 7168
    %33 = vst.msk [vmem:[%s1] sm:$0xff] %vm32, %v31
    // Predicated region
    $region10: #{tpu_custom_call.1} parent=1 // pred_check
      _
    $region11: #{tpu_custom_call.1} parent=1 // pred_check_branch
      %35 = sbr.rel (0) target = $region13
    $region12: #{tpu_custom_call.1} parent=1 // pred_region
      _
    $region13: #{tpu_custom_call.1} parent=1 // pred_fallthru
      _
    // Predicated region
    $region14: #{tpu_custom_call.1} parent=1 // pred_check
      _
    $region15: #{tpu_custom_call.1} parent=1 // pred_check_branch
      %37 = sbr.rel (0) target = $region17
    $region16: #{tpu_custom_call.1} parent=1 // pred_region
      _
    $region17: #{tpu_custom_call.1} parent=1 // pred_fallthru
      _
    %38 = vsyncpa [#allocation3], 1

</llo_original>
